<compile_context>
chip_gen: v6e
topology: v6e:2x2x1
jax: 0.10.0
libtpu: 0.0.40
codegen_flags: <defaults>
</compile_context>

<pallas_src>
import jax
import jax.numpy as jnp
import numpy as np
from jax.experimental import pallas as pl
from jax.experimental.pallas import tpu as pltpu

EPS = 1e-5            # RevIN eps
LEAKY_SLOPE = 0.01    # nn.LeakyReLU default negative_slope


def paifilter_kernel(x_ref, gamma_ref, beta_ref, invg_ref,
                     w1t_ref, b1_ref, w2t_ref, b2_ref, out_ref):
    # x_ref:      (T, tile_m) bf16  columns = (session, batch, channel), rows = time
    # gamma/beta: (1, tile_m) f32   RevIN affine params per column (lane-dense)
    # invg_ref:   (1, tile_m) f32   host-precomputed 1 / (gamma + EPS^2)
    # w1t_ref:    (H, T) bf16       == ((Wcirc / sqrt(T)) @ W1)^T (circular conv folded)
    # b1_ref:     (H, 1) f32 ; w2t_ref: (P, H) bf16 ; b2_ref: (P, 1) f32
    x = x_ref[...].astype(jnp.float32)          # stats always in f32 (v5e-safe)
    gamma = gamma_ref[...]
    beta = beta_ref[...]

    # ---- RevIN 'norm': one rsqrt per column, rest is VALU multiply/add ----
    mean = jnp.mean(x, axis=0, keepdims=True)               # (1, tile_m)
    xc = x - mean                                           # hoisted, reused twice
    var = jnp.mean(xc * xc, axis=0, keepdims=True)          # unbiased=False
    inv_std = jax.lax.rsqrt(var + EPS)                      # no T*tile_m divides
    std = (var + EPS) * inv_std                             # == sqrt(var + EPS)
    xn = xc * (inv_std * gamma) + beta                      # (T, tile_m) f32

    # ---- fused (circular conv + Linear) -> LeakyReLU -> Linear; bf16 MXU, f32 acc ----
    h = jnp.dot(w1t_ref[...], xn.astype(w1t_ref.dtype),
                preferred_element_type=jnp.float32) + b1_ref[...]   # (H, tile_m)
    h = jnp.where(h > 0, h, LEAKY_SLOPE * h)
    p = jnp.dot(w2t_ref[...], h.astype(w2t_ref.dtype),
                preferred_element_type=jnp.float32) + b2_ref[...]   # (P, tile_m)

    # ---- RevIN 'denorm': reciprocal came from the host, multiplies only ----
    p = (p - beta) * invg_ref[...]
    out_ref[...] = p * std + mean


def paifilter_forward(x_list, gammas, betas, w, w1, b1, w2, b2, pred_len,
                      tile_m=1024, x_dtype=jnp.bfloat16):
    """Shared-weight multi-session forward.  x_list[i]: (T, B_i, C_i) -> [(P, B_i, C_i)]."""
    T = x_list[0].shape[0]
    P = pred_len
    H = w1.shape[1]

    # Fold circulant (circular conv == ortho rfft*rfft->irfft) + 1/sqrt(T) into Linear 1.
    idx = (jnp.arange(T)[None, :] - jnp.arange(T)[:, None]) % T     # Wcirc[s,t] = w[(t-s)%T]
    wcirc = w[0][idx].astype(jnp.float32)                           # (T, T), host-side only
    w1_eff = (wcirc * (1.0 / float(np.sqrt(T)))) @ w1               # (T, H) f32
    w1t = w1_eff.T.astype(jnp.bfloat16)                             # (H, T)
    w2t = w2.T.astype(jnp.bfloat16)                                 # (P, H)
    b1c = b1.reshape(H, 1).astype(jnp.float32)
    b2c = b2.reshape(P, 1).astype(jnp.float32)

    # Concatenate every session into one (T, M) slab; column index = (session, batch, ch).
    shapes, cols, g_rows, b_rows = [], [], [], []
    for x, g, bt in zip(x_list, gammas, betas):
        _, B, C = x.shape
        shapes.append((B, C))
        if B * C == 0:                       # mirrors the empty-session early-out
            continue
        cols.append(x.reshape(T, B * C))
        g_rows.append(jnp.tile(g, (B,)))
        b_rows.append(jnp.tile(bt, (B,)))

    if not cols:
        return [jnp.zeros((P, B, C), jnp.float32) for (B, C) in shapes]

    # bf16 x halves the dominant HBM read (kernel is memory-bound); stats stay f32 in-kernel.
    xm = jnp.concatenate(cols, axis=1).astype(x_dtype)              # (T, M)
    grow = jnp.concatenate(g_rows)[None, :].astype(jnp.float32)     # (1, M)
    brow = jnp.concatenate(b_rows)[None, :].astype(jnp.float32)     # (1, M)
    M = xm.shape[1]

    # Lane tile: multiple of 128, as large as the slab allows ...
    m128 = pl.cdiv(M, 128) * 128
    tile_m = min(tile_m, m128)
    # ... but keep >=2 grid steps when the slab permits, so v7x's 2 TensorCores both get
    # work on the parallel axis.  The extra ~0.35 us/step on single-core v5e/v6e is noise.
    if m128 >= 256:
        tile_m = min(tile_m, max(128, (m128 // 2) // 128 * 128))
    Mp = pl.cdiv(M, tile_m) * tile_m
    pad = Mp - M
    xm = jnp.pad(xm, ((0, 0), (0, pad)))
    grow = jnp.pad(grow, ((0, 0), (0, pad)), constant_values=1.0)   # gamma=1 on pad cols
    brow = jnp.pad(brow, ((0, 0), (0, pad)))                        # beta=0  on pad cols
    # Padded columns: var=0 -> inv_std = 1/sqrt(EPS) (finite) and gamma=1 -> invg finite;
    # their outputs are discarded below.  Keep the gamma pad at 1.0 (NOT 0.0).
    invg = 1.0 / (grow + EPS * EPS)                                 # host-side reciprocal

    # Explicit VMEM budget (v7x: 64 MiB physical / 32 MiB scoped default).
    itemx = jnp.dtype(x_dtype).itemsize
    p_pad = pl.cdiv(P, 8) * 8
    vmem_est = (2 * T * tile_m * itemx                 # double-buffered x blocks
                + 2 * p_pad * tile_m * 4               # double-buffered out blocks
                + 3 * 2 * 8 * tile_m * 4               # gamma/beta/invg rows
                + 2 * ((H * T + P * H) * 2 + (H + P) * 128 * 4)   # weights + biases
                + (2 * T + H + p_pad) * tile_m * 4)    # in-kernel f32 temporaries
    vmem_limit = max(32 << 20, min(64 << 20, int(1.5 * vmem_est) + (2 << 20)))

    grid = (Mp // tile_m,)
    out = pl.pallas_call(
        paifilter_kernel,
        out_shape=jax.ShapeDtypeStruct((P, Mp), jnp.float32),
        grid=grid,
        in_specs=[
            pl.BlockSpec((T, tile_m), lambda i: (0, i)),
            pl.BlockSpec((1, tile_m), lambda i: (0, i)),
            pl.BlockSpec((1, tile_m), lambda i: (0, i)),
            pl.BlockSpec((1, tile_m), lambda i: (0, i)),
            pl.BlockSpec((H, T), lambda i: (0, 0)),
            pl.BlockSpec((H, 1), lambda i: (0, 0)),
            pl.BlockSpec((P, H), lambda i: (0, 0)),
            pl.BlockSpec((P, 1), lambda i: (0, 0)),
        ],
        out_specs=pl.BlockSpec((P, tile_m), lambda i: (0, i)),
        compiler_params=pltpu.CompilerParams(
            dimension_semantics=("parallel",),
            vmem_limit_bytes=vmem_limit),
        # TODO(synk): if a profile at large M still shows exposed DMA (wall >> compute),
        # add pipeline_mode=pl.Buffered(3) on the x/out specs and re-sweep tile_m.
    )(xm, grow, brow, invg, w1t, b1c, w2t, b2c)

    # Split the (P, Mp) slab back into per-session (P, B, C) outputs (PyTorch layout).
    outs, off = [], 0
    for (B, C) in shapes:
        sz = B * C
        if sz == 0:
            outs.append(jnp.zeros((P, B, C), jnp.float32))
        else:
            outs.append(out[:, off:off + sz].reshape(P, B, C))
            off += sz
    return outs


# ---------------- pure-JAX reference (ortho FFT, exactly like the PyTorch code) ----------------
def reference_session(x, gamma, beta, w, w1, b1, w2, b2, pred_len):
    x = jnp.transpose(x, (1, 0, 2))                       # (B, T, C)
    mean = jnp.mean(x, axis=1, keepdims=True)
    std = jnp.sqrt(jnp.var(x, axis=1, keepdims=True) + EPS)
    z = (x - mean) / std * gamma + beta
    z = jnp.transpose(z, (0, 2, 1))                       # (B, C, T)
    n = z.shape[-1]
    y = jnp.fft.irfft(jnp.fft.rfft(z, axis=2, norm='ortho') *
                      jnp.fft.rfft(w, axis=1, norm='ortho'),
                      n=n, axis=2, norm='ortho')
    h = y @ w1 + b1
    h = jnp.where(h > 0, h, LEAKY_SLOPE * h)
    p = h @ w2 + b2                                       # (B, C, P)
    p = jnp.transpose(p, (0, 2, 1))                       # (B, P, C)
    p = (p - beta) / (gamma + EPS * EPS)
    p = p * std + mean
    return jnp.transpose(p, (1, 0, 2))                    # (P, B, C)


if __name__ == "__main__":
    # Config: seq_length=10, pred_length=2 -> seq_len = embed_size = 8, hidden = 32,
    # batch = 2, one session group with 4 and 6 channels.
    seq_length, pred_length, hidden = 10, 2, 32
    T = seq_length - pred_length
    P = pred_length
    B = 2
    input_size = [[4, 6]]
    sizes = [c for group in input_size for c in group]    # itertools.chain(*input_size)

    key = jax.random.PRNGKey(0)
    ks = jax.random.split(key, 5 + 3 * len(sizes))

    # Parameters (deterministic synthetic init).
    w = 0.02 * jax.random.normal(ks[0], (1, T), jnp.float32)            # self.w
    w1 = 0.1 * jax.random.normal(ks[1], (T, hidden), jnp.float32)       # fc[0].weight.T
    b1 = 0.1 * jax.random.normal(ks[2], (1, hidden), jnp.float32)       # fc[0].bias
    w2 = 0.1 * jax.random.normal(ks[3], (hidden, P), jnp.float32)       # fc[2].weight.T
    b2 = 0.1 * jax.random.normal(ks[4], (1, P), jnp.float32)            # fc[2].bias
    gammas = [1.0 + 0.1 * jax.random.normal(ks[5 + i], (c,), jnp.float32)
              for i, c in enumerate(sizes)]                             # RevIN affine_weight
    betas = [0.1 * jax.random.normal(ks[5 + len(sizes) + i], (c,), jnp.float32)
             for i, c in enumerate(sizes)]                              # RevIN affine_bias

    # Inputs: one (T, B, C) tensor per session.
    x_list = [jax.random.normal(ks[5 + 2 * len(sizes) + i], (T, B, c), jnp.float32)
              for i, c in enumerate(sizes)]

    outs = paifilter_forward(x_list, gammas, betas, w, w1, b1, w2, b2, P)
    outs = jax.block_until_ready(outs)

    for x, g, bt, o in zip(x_list, gammas, betas, outs):
        ref = reference_session(x, g, bt, w, w1, b1, w2, b2, P)
        np.testing.assert_allclose(np.asarray(o), np.asarray(ref), rtol=1e-2, atol=1e-2)

    print("KERNEL_OK")
</pallas_src>

<mosaic_0001>
module attributes {stable_mosaic.version = 11 : i64} {
  func.func @paifilter_kernel(%arg0: i32, %arg1: memref<8x128xbf16, #tpu.memory_space<vmem>>, %arg2: memref<1x128xf32, #tpu.memory_space<vmem>>, %arg3: memref<1x128xf32, #tpu.memory_space<vmem>>, %arg4: memref<1x128xf32, #tpu.memory_space<vmem>>, %arg5: memref<32x8xbf16, #tpu.memory_space<vmem>>, %arg6: memref<32x1xf32, #tpu.memory_space<vmem>>, %arg7: memref<2x32xbf16, #tpu.memory_space<vmem>>, %arg8: memref<2x1xf32, #tpu.memory_space<vmem>>, %arg9: memref<2x128xf32, #tpu.memory_space<vmem>>) attributes {dimension_semantics = [#tpu.dimension_semantics<parallel>], iteration_bounds = array<i64: 1>, scalar_prefetch = 0 : i64, scratch_operands = 0 : i64, tpu.core_type = #tpu.core_type<tc>, window_params = [{transform_indices = @transform_0, window_bounds = array<i64: 8, 128>}, {transform_indices = @transform_1, window_bounds = array<i64: 1, 128>}, {transform_indices = @transform_2, window_bounds = array<i64: 1, 128>}, {transform_indices = @transform_3, window_bounds = array<i64: 1, 128>}, {pipeline_mode = #tpu.pipeline_mode<synchronous>, transform_indices = @transform_4, window_bounds = array<i64: 32, 8>}, {pipeline_mode = #tpu.pipeline_mode<synchronous>, transform_indices = @transform_5, window_bounds = array<i64: 32, 1>}, {pipeline_mode = #tpu.pipeline_mode<synchronous>, transform_indices = @transform_6, window_bounds = array<i64: 2, 32>}, {pipeline_mode = #tpu.pipeline_mode<synchronous>, transform_indices = @transform_7, window_bounds = array<i64: 2, 1>}, {transform_indices = @transform_8, window_bounds = array<i64: 2, 128>}]} {
    %c0 = arith.constant 0 : index
    %c0_0 = arith.constant 0 : index
    %0 = vector.load %arg1[%c0, %c0_0] : memref<8x128xbf16, #tpu.memory_space<vmem>>, vector<8x128xbf16>
    %1 = arith.extf %0 : vector<8x128xbf16> to vector<8x128xf32>
    %c0_1 = arith.constant 0 : index
    %c0_2 = arith.constant 0 : index
    %2 = vector.load %arg2[%c0_1, %c0_2] : memref<1x128xf32, #tpu.memory_space<vmem>>, vector<1x128xf32>
    %c0_3 = arith.constant 0 : index
    %c0_4 = arith.constant 0 : index
    %3 = vector.load %arg3[%c0_3, %c0_4] : memref<1x128xf32, #tpu.memory_space<vmem>>, vector<1x128xf32>
    %cst = arith.constant dense<0.000000e+00> : vector<128xf32>
    %4 = vector.multi_reduction <add>, %1, %cst [0] : vector<8x128xf32> to vector<128xf32>
    %5 = vector.shape_cast %4 : vector<128xf32> to vector<1x128xf32>
    %cst_5 = arith.constant 8.000000e+00 : f32
    %6 = vector.broadcast %cst_5 : f32 to vector<1x128xf32>
    %7 = arith.divf %5, %6 : vector<1x128xf32>
    %8 = vector.broadcast %7 : vector<1x128xf32> to vector<8x128xf32>
    %9 = arith.subf %1, %8 : vector<8x128xf32>
    %10 = arith.mulf %9, %9 : vector<8x128xf32>
    %cst_6 = arith.constant dense<0.000000e+00> : vector<128xf32>
    %11 = vector.multi_reduction <add>, %10, %cst_6 [0] : vector<8x128xf32> to vector<128xf32>
    %12 = vector.shape_cast %11 : vector<128xf32> to vector<1x128xf32>
    %cst_7 = arith.constant 8.000000e+00 : f32
    %13 = vector.broadcast %cst_7 : f32 to vector<1x128xf32>
    %14 = arith.divf %12, %13 : vector<1x128xf32>
    %cst_8 = arith.constant 9.99999974E-6 : f32
    %15 = vector.broadcast %cst_8 : f32 to vector<1x128xf32>
    %16 = arith.addf %14, %15 : vector<1x128xf32>
    %17 = math.rsqrt %16 : vector<1x128xf32>
    %cst_9 = arith.constant 9.99999974E-6 : f32
    %18 = vector.broadcast %cst_9 : f32 to vector<1x128xf32>
    %19 = arith.addf %14, %18 : vector<1x128xf32>
    %20 = arith.mulf %19, %17 : vector<1x128xf32>
    %21 = arith.mulf %17, %2 : vector<1x128xf32>
    %22 = vector.broadcast %21 : vector<1x128xf32> to vector<8x128xf32>
    %23 = arith.mulf %9, %22 : vector<8x128xf32>
    %24 = vector.broadcast %3 : vector<1x128xf32> to vector<8x128xf32>
    %25 = arith.addf %23, %24 : vector<8x128xf32>
    %c0_10 = arith.constant 0 : index
    %c0_11 = arith.constant 0 : index
    %26 = vector.load %arg5[%c0_10, %c0_11] : memref<32x8xbf16, #tpu.memory_space<vmem>>, vector<32x8xbf16>
    %27 = arith.truncf %25 : vector<8x128xf32> to vector<8x128xbf16>
    %cst_12 = arith.constant dense<0.000000e+00> : vector<32x128xf32>
    %28 = tpu.matmul %26, %27, %cst_12 {dimension_numbers = #tpu.dot_dimension_numbers<[1], [0], [0], [1], [0, 0, 1, 1], [], []>} : vector<32x8xbf16>, vector<8x128xbf16>, vector<32x128xf32> -> vector<32x128xf32>
    %c0_13 = arith.constant 0 : index
    %c0_14 = arith.constant 0 : index
    %29 = vector.load %arg6[%c0_13, %c0_14] : memref<32x1xf32, #tpu.memory_space<vmem>>, vector<32x1xf32>
    %30 = vector.broadcast %29 : vector<32x1xf32> to vector<32x128xf32>
    %31 = arith.addf %28, %30 : vector<32x128xf32>
    %cst_15 = arith.constant 0.000000e+00 : f32
    %32 = vector.broadcast %cst_15 : f32 to vector<32x128xf32>
    %33 = arith.cmpf ogt, %31, %32 : vector<32x128xf32>
    %cst_16 = arith.constant 0.00999999977 : f32
    %34 = vector.broadcast %cst_16 : f32 to vector<32x128xf32>
    %35 = arith.mulf %34, %31 : vector<32x128xf32>
    %36 = arith.select %33, %31, %35 : vector<32x128xi1>, vector<32x128xf32>
    %c0_17 = arith.constant 0 : index
    %c0_18 = arith.constant 0 : index
    %37 = vector.load %arg7[%c0_17, %c0_18] : memref<2x32xbf16, #tpu.memory_space<vmem>>, vector<2x32xbf16>
    %38 = arith.truncf %36 : vector<32x128xf32> to vector<32x128xbf16>
    %cst_19 = arith.constant dense<0.000000e+00> : vector<2x128xf32>
    %39 = tpu.matmul %37, %38, %cst_19 {dimension_numbers = #tpu.dot_dimension_numbers<[1], [0], [0], [1], [0, 0, 1, 1], [], []>} : vector<2x32xbf16>, vector<32x128xbf16>, vector<2x128xf32> -> vector<2x128xf32>
    %c0_20 = arith.constant 0 : index
    %c0_21 = arith.constant 0 : index
    %40 = vector.load %arg8[%c0_20, %c0_21] : memref<2x1xf32, #tpu.memory_space<vmem>>, vector<2x1xf32>
    %41 = vector.broadcast %40 : vector<2x1xf32> to vector<2x128xf32>
    %42 = arith.addf %39, %41 : vector<2x128xf32>
    %43 = vector.broadcast %3 : vector<1x128xf32> to vector<2x128xf32>
    %44 = arith.subf %42, %43 : vector<2x128xf32>
    %c0_22 = arith.constant 0 : index
    %c0_23 = arith.constant 0 : index
    %45 = vector.load %arg4[%c0_22, %c0_23] : memref<1x128xf32, #tpu.memory_space<vmem>>, vector<1x128xf32>
    %46 = vector.broadcast %45 : vector<1x128xf32> to vector<2x128xf32>
    %47 = arith.mulf %44, %46 : vector<2x128xf32>
    %48 = vector.broadcast %20 : vector<1x128xf32> to vector<2x128xf32>
    %49 = arith.mulf %47, %48 : vector<2x128xf32>
    %50 = vector.broadcast %7 : vector<1x128xf32> to vector<2x128xf32>
    %51 = arith.addf %49, %50 : vector<2x128xf32>
    %c0_24 = arith.constant 0 : index
    %c0_25 = arith.constant 0 : index
    %52 = vector.load %arg9[%c0_24, %c0_25] : memref<2x128xf32, #tpu.memory_space<vmem>>, vector<2x128xf32>
    tpu.vector_store %arg9[%c0_24, %c0_25], %51 {strides = array<i32>} : memref<2x128xf32, #tpu.memory_space<vmem>>, vector<2x128xf32>,
    return
  }
  func.func @transform_0(%arg0: i32) -> (i32, i32) {
    %c0_i32 = arith.constant 0 : i32
    %c0_i32_0 = arith.constant 0 : i32
    return %c0_i32, %arg0 : i32, i32
  }
  func.func @transform_1(%arg0: i32) -> (i32, i32) {
    %c0_i32 = arith.constant 0 : i32
    %c0_i32_0 = arith.constant 0 : i32
    return %c0_i32, %arg0 : i32, i32
  }
  func.func @transform_2(%arg0: i32) -> (i32, i32) {
    %c0_i32 = arith.constant 0 : i32
    %c0_i32_0 = arith.constant 0 : i32
    return %c0_i32, %arg0 : i32, i32
  }
  func.func @transform_3(%arg0: i32) -> (i32, i32) {
    %c0_i32 = arith.constant 0 : i32
    %c0_i32_0 = arith.constant 0 : i32
    return %c0_i32, %arg0 : i32, i32
  }
  func.func @transform_4(%arg0: i32) -> (i32, i32) {
    %c0_i32 = arith.constant 0 : i32
    %c0_i32_0 = arith.constant 0 : i32
    %c0_i32_1 = arith.constant 0 : i32
    return %c0_i32, %c0_i32_0 : i32, i32
  }
  func.func @transform_5(%arg0: i32) -> (i32, i32) {
    %c0_i32 = arith.constant 0 : i32
    %c0_i32_0 = arith.constant 0 : i32
    %c0_i32_1 = arith.constant 0 : i32
    return %c0_i32, %c0_i32_0 : i32, i32
  }
  func.func @transform_6(%arg0: i32) -> (i32, i32) {
    %c0_i32 = arith.constant 0 : i32
    %c0_i32_0 = arith.constant 0 : i32
    %c0_i32_1 = arith.constant 0 : i32
    return %c0_i32, %c0_i32_0 : i32, i32
  }
  func.func @transform_7(%arg0: i32) -> (i32, i32) {
    %c0_i32 = arith.constant 0 : i32
    %c0_i32_0 = arith.constant 0 : i32
    %c0_i32_1 = arith.constant 0 : i32
    return %c0_i32, %c0_i32_0 : i32, i32
  }
  func.func @transform_8(%arg0: i32) -> (i32, i32) {
    %c0_i32 = arith.constant 0 : i32
    %c0_i32_0 = arith.constant 0 : i32
    return %c0_i32, %arg0 : i32, i32
  }
}

</mosaic_0001>

<llo_original>
// kernel: tpu_custom_call.1
$region0: #{tpu_custom_call.1}
  #allocation0 [shape = 'u32[]', space=smem, size = 0x4, offset = 0x4, fixed_abs, tag = 'smem constant byte address 0x4 - core index']
  #allocation1 [shape = 'u32[144,128]{1,0:T(1,128)}', space=vmem, size = 0x12000, scoped, tag = 'internal scratch']
  %s0 = inlined_call_operand.vmem [shape: bf16[8,128], index: 0, kind: input, shape index: {}]
  %s1 = inlined_call_operand.vmem [shape: f32[1,128], index: 1, kind: input, shape index: {}]
  %s2 = inlined_call_operand.vmem [shape: f32[1,128], index: 2, kind: input, shape index: {}]
  %s3 = inlined_call_operand.vmem [shape: f32[1,128], index: 3, kind: input, shape index: {}]
  %s4 = inlined_call_operand.vmem [shape: bf16[32,8], index: 4, kind: input, shape index: {}]
  %s5 = inlined_call_operand.vmem [shape: f32[32,1], index: 5, kind: input, shape index: {}]
  %s6 = inlined_call_operand.vmem [shape: bf16[2,32], index: 6, kind: input, shape index: {}]
  %s7 = inlined_call_operand.vmem [shape: f32[2,1], index: 7, kind: input, shape index: {}]
  %s8 = inlined_call_operand.hbm [shape: f32[2,128], index: 8, kind: output, shape index: {}]
  %s9 = sld [smem:[#allocation0]]
  $region42: #{tpu_custom_call.1} parent=0
    _
  %s11 = ssub.s32 1, %s9
  %s12 = scalar_select 0, %s11, %s9
  $region1: #{tpu_custom_call.1} parent=0
    #allocation2 [shape = 'u8[1024]{0}', space=vmem, size = 0x400, scoped, tag = 'output window, operand 0, single buffered']
    #allocation3 [shape = 's32[1]{0}', space=sflag, size = 0x4, scoped, tag = 'scoped memory for tpu_custom_call.1']
    %13 = vsyncpa [#allocation3], 0
    // Predicated region
    $region2: #{tpu_custom_call.1} parent=1 // pred_check
      _
    $region3: #{tpu_custom_call.1} parent=1 // pred_check_branch
      %15 = sbr.rel (0) target = $region5
    $region4: #{tpu_custom_call.1} parent=1 // pred_region
      _
    $region5: #{tpu_custom_call.1} parent=1 // pred_fallthru
      _
    // Predicated region
    $region6: #{tpu_custom_call.1} parent=1 // pred_check
      _
    $region7: #{tpu_custom_call.1} parent=1 // pred_check_branch
      %17 = sbr.rel (0) target = $region9
    $region8: #{tpu_custom_call.1} parent=1 // pred_region
      _
    $region9: #{tpu_custom_call.1} parent=1 // pred_fallthru
      _
    // Predicated region
    $region10: #{tpu_custom_call.1} parent=1 // pred_check
      _
    $region11: #{tpu_custom_call.1} parent=1 // pred_check_branch
      %19 = sbr.rel (0) target = $region13
    $region12: #{tpu_custom_call.1} parent=1 // pred_region
      _
    $region13: #{tpu_custom_call.1} parent=1 // pred_fallthru
      _
    // Predicated region
    $region14: #{tpu_custom_call.1} parent=1 // pred_check
      _
    $region15: #{tpu_custom_call.1} parent=1 // pred_check_branch
      %21 = sbr.rel (0) target = $region17
    $region16: #{tpu_custom_call.1} parent=1 // pred_region
      _
    $region17: #{tpu_custom_call.1} parent=1 // pred_fallthru
      _
    // Predicated region
    $region18: #{tpu_custom_call.1} parent=1 // pred_check
      _
    $region19: #{tpu_custom_call.1} parent=1 // pred_check_branch
      %23 = sbr.rel (0) target = $region21
    $region20: #{tpu_custom_call.1} parent=1 // pred_region
      _
    $region21: #{tpu_custom_call.1} parent=1 // pred_fallthru
      _
    // Predicated region
    $region22: #{tpu_custom_call.1} parent=1 // pred_check
      _
    $region23: #{tpu_custom_call.1} parent=1 // pred_check_branch
      %25 = sbr.rel (0) target = $region25
    $region24: #{tpu_custom_call.1} parent=1 // pred_region
      _
    $region25: #{tpu_custom_call.1} parent=1 // pred_fallthru
      _
    // Predicated region
    $region26: #{tpu_custom_call.1} parent=1 // pred_check
      _
    $region27: #{tpu_custom_call.1} parent=1 // pred_check_branch
      %27 = sbr.rel (0) target = $region29
    $region28: #{tpu_custom_call.1} parent=1 // pred_region
      _
    $region29: #{tpu_custom_call.1} parent=1 // pred_fallthru
      _
    // Predicated region
    $region30: #{tpu_custom_call.1} parent=1 // pred_check
      _
    $region31: #{tpu_custom_call.1} parent=1 // pred_check_branch
      %29 = sbr.rel (0) target = $region33
    $region32: #{tpu_custom_call.1} parent=1 // pred_region
      _
    $region33: #{tpu_custom_call.1} parent=1 // pred_fallthru
      _
    %v31 = vld [vmem:[%s0] sm:$0xf]
    %v32 = vunpack.c.l.bf16 %v31
    %v33 = vld [vmem:[%s1] sm:$0x1]
    %v34 = vld [vmem:[%s2] sm:$0x1]
    %v35 = vrot.slane %v32, 4
    %v36 = vadd.f32 %v32, %v35
    %v37 = vrot.slane %v36, 2
    %v38 = vadd.f32 %v36, %v37
    %v39 = vrot.slane %v38, 1
    %v40 = vadd.f32 %v38, %v39
    %v41 = vrcp.pop 8.0
    %v42 = vmul.f32 %v40, %v41
    %v43 = vsub.f32 %v32, %v42
    %v44 = vmul.f32 %v43, %v43
    %v45 = vrot.slane %v44, 4
    %v46 = vadd.f32 %v44, %v45
    %v47 = vrot.slane %v46, 2
    %v48 = vadd.f32 %v46, %v47
    %v49 = vrot.slane %v48, 1
    %v50 = vadd.f32 %v48, %v49
    %v51 = vmul.f32 %v50, %v41
    %v52 = vadd.f32 %v51, 1e-05
    %v53 = vrsqrt.pop %v52
    %v54 = vmul.f32 %v52, %v53
    %v55 = vmul.f32 %v53, %v33
    %v56 = vlaneseq
    %v57 = vshrl.u32 %v56, 7
    %v58 = vsub.s32 0, %v57
    %v59 = vrot.slane %v55, %v58
    %v60 = vmul.f32 %v43, %v59
    %v62 = vlaneseq
    %v63 = vshrl.u32 %v62, 7
    %v64 = vsub.s32 0, %v63
    %v65 = vrot.slane %v34, %v64
    %v67 = vadd.f32 %v60, %v65
    %v68 = vld [vmem:[%s4] sm:$0xf]
    %v69 = vld [vmem:[%s4 + $0x4] sm:$0xf]
    %v70 = vld [vmem:[%s4 + $0x8] sm:$0xf]
    %v71 = vld [vmem:[%s4 + $0xc] sm:$0xf]
    %v72 = vpack.c.bf16 %v67, %v67
    %v73 = vld [vmem:[%s5] sm:$0xff]
    %v74 = vld [vmem:[%s5 + $0x8] sm:$0xff]
    %v75 = vld [vmem:[%s5 + $0x10] sm:$0xff]
    %v76 = vld [vmem:[%s5 + $0x18] sm:$0xff]
    %78 = vset.pattern.permute.xlu0 0
    %79 = vperm.xlu0 %78, %v73
    %v80 = vpop.permute.xlu0 %79
    %83 = vset.pattern.permute.xlu0 0
    %84 = vperm.xlu0 %83, %v74
    %v85 = vpop.permute.xlu0 %84
    %88 = vset.pattern.permute.xlu0 0
    %89 = vperm.xlu0 %88, %v75
    %v90 = vpop.permute.xlu0 %89
    %93 = vset.pattern.permute.xlu0 0
    %94 = vperm.xlu0 %93, %v76
    %v95 = vpop.permute.xlu0 %94
    %v101 = vunpack.c.l.b16 %v68
    %v102 = vunpack.c.l.b16 %v69
    %v103 = vunpack.c.l.b16 %v70
    %v104 = vunpack.c.l.b16 %v71
    %v105 = vpack.c.b16 %v102, %v101
    %v106 = vpack.c.b16 %v104, %v103
    %vm107 = vcmask 64512
    %v109 = vsel %vm107, %v105, 0
    %v112 = vsel %vm107, %v106, 0
    %vm114 = vcmask 1043456
    %v116 = vsel %vm114, %v72, 0
    %118 = vmatprep.subr.bf16.mxu0 0
    %119 = vmatpush1.bf16.msra.mxu0 0
    %120 = vmatprep.subr.bf16.mxu0 0
    %121 = vmatpush1.bf16.msra.mxu0 0
    %122 = vmatprep.subr.bf16.mxu0 0
    %123 = vmatpush1.bf16.msra.mxu0 0
    %124 = vmatprep.subr.bf16.mxu0 0
    %125 = vmatpush1.bf16.msra.mxu0 0
    %126 = vmatprep.subr.bf16.mxu0 0
    %127 = vmatpush1.bf16.msra.mxu0 0
    %128 = vmatprep.subr.bf16.mxu0 0
    %129 = vmatpush1.bf16.msra.mxu0 0
    %130 = vmatprep.subr.bf16.mxu0 0
    %131 = vmatpush1.bf16.msra.mxu0 0
    %132 = vmatprep.subr.bf16.mxu0 0
    %133 = vmatpush1.bf16.msra.mxu0 %v116
    %134 = vmatprep.subr.bf16.mxu0 0
    %135 = vmatpush2.bf16.msra.mxu0 0
    %136 = vmatprep.subr.bf16.mxu0 0
    %137 = vmatpush2.bf16.msra.mxu0 0
    %138 = vmatprep.subr.bf16.mxu0 0
    %139 = vmatpush2.bf16.msra.mxu0 0
    %140 = vmatprep.subr.bf16.mxu0 0
    %141 = vmatpush2.bf16.msra.mxu0 0
    %142 = vmatprep.subr.bf16.mxu0 0
    %143 = vmatpush2.bf16.msra.mxu0 0
    %144 = vmatprep.subr.bf16.mxu0 0
    %145 = vmatpush2.bf16.msra.mxu0 0
    %146 = vmatprep.subr.bf16.mxu0 0
    %147 = vmatpush2.bf16.msra.mxu0 0
    %148 = vmatprep.subr.bf16.mxu0 0
    %149 = vmatpush2.bf16.msra.mxu0 0
    %150 = vmatprep.mubr.bf16.mxu0 0
    %151 = vmatmul.mubr.bf16.gmra.mxu0 %v109
    %v152 = vpop.f32.mrf.mxu0
    %v153 = vadd.f32 %v80, %v152
    %v154 = vpop.f32.mrf.mxu0
    %v155 = vpop.f32.mrf.mxu0
    %v156 = vadd.f32 %v85, %v155
    %v157 = vpop.f32.mrf.mxu0
    %158 = vmatprep.mubr.bf16.mxu0 0
    %159 = vmatmul.mubr.bf16.gmra.mxu0 %v112
    %v160 = vpop.f32.mrf.mxu0
    %v161 = vadd.f32 %v90, %v160
    %v162 = vpop.f32.mrf.mxu0
    %v163 = vpop.f32.mrf.mxu0
    %v164 = vadd.f32 %v95, %v163
    %v165 = vpop.f32.mrf.mxu0
    %166 = vdwg.mxu0
    %vm167 = vcmp.gt.f32.partialorder %v153, 0.0
    %vm168 = vcmp.gt.f32.partialorder %v156, 0.0
    %vm169 = vcmp.gt.f32.partialorder %v161, 0.0
    %vm170 = vcmp.gt.f32.partialorder %v164, 0.0
    %v171 = vmul.f32 %v153, 0.01
    %v172 = vmul.f32 %v156, 0.01
    %v173 = vmul.f32 %v161, 0.01
    %v174 = vmul.f32 %v164, 0.01
    %v175 = vsel %vm167, %v153, %v171
    %v176 = vsel %vm168, %v156, %v172
    %v177 = vsel %vm169, %v161, %v173
    %v178 = vsel %vm170, %v164, %v174
    %v179 = vld [vmem:[%s6] sm:$0x1]
    %v180 = vpack.c.bf16 %v176, %v175
    %v181 = vpack.c.bf16 %v178, %v177
    %v182 = vld [vmem:[%s7] sm:$0x3]
    %184 = vset.pattern.permute.xlu0 0
    %185 = vperm.xlu0 %184, %v182
    %v186 = vpop.permute.xlu0 %185
    %vm188 = vcmask 261120
    %v190 = vsel %vm188, %v179, 0
    %192 = vmatprep.subr.bf16.mxu0 0
    %193 = vmatpush1.bf16.msra.mxu0 0
    %194 = vmatprep.subr.bf16.mxu0 0
    %195 = vmatpush1.bf16.msra.mxu0 0
    %196 = vmatprep.subr.bf16.mxu0 0
    %197 = vmatpush1.bf16.msra.mxu0 0
    %198 = vmatprep.subr.bf16.mxu0 0
    %199 = vmatpush1.bf16.msra.mxu0 0
    %200 = vmatprep.subr.bf16.mxu0 0
    %201 = vmatpush1.bf16.msra.mxu0 0
    %202 = vmatprep.subr.bf16.mxu0 0
    %203 = vmatpush1.bf16.msra.mxu0 0
    %204 = vmatprep.subr.bf16.mxu0 0
    %205 = vmatpush1.bf16.msra.mxu0 %v181
    %206 = vmatprep.subr.bf16.mxu0 0
    %207 = vmatpush1.bf16.msra.mxu0 %v180
    %208 = vmatprep.subr.bf16.mxu0 0
    %209 = vmatpush2.bf16.msra.mxu0 0
    %210 = vmatprep.subr.bf16.mxu0 0
    %211 = vmatpush2.bf16.msra.mxu0 0
    %212 = vmatprep.subr.bf16.mxu0 0
    %213 = vmatpush2.bf16.msra.mxu0 0
    %214 = vmatprep.subr.bf16.mxu0 0
    %215 = vmatpush2.bf16.msra.mxu0 0
    %216 = vmatprep.subr.bf16.mxu0 0
    %217 = vmatpush2.bf16.msra.mxu0 0
    %218 = vmatprep.subr.bf16.mxu0 0
    %219 = vmatpush2.bf16.msra.mxu0 0
    %220 = vmatprep.subr.bf16.mxu0 0
    %221 = vmatpush2.bf16.msra.mxu0 0
    %222 = vmatprep.subr.bf16.mxu0 0
    %223 = vmatpush2.bf16.msra.mxu0 0
    %224 = vmatprep.mubr.bf16.mxu0 0
    %225 = vmatmul.mubr.bf16.gmra.mxu0 %v190
    %v226 = vpop.f32.mrf.mxu0
    %v227 = vadd.f32 %v186, %v226
    %v228 = vpop.f32.mrf.mxu0
    %v229 = vpop.f32.mrf.mxu0
    %v230 = vpop.f32.mrf.mxu0
    %231 = vdwg.mxu0
    %v232 = vsub.f32 %v227, %v65
    %v233 = vld [vmem:[%s3] sm:$0x1]
    %v235 = vlaneseq
    %v236 = vshrl.u32 %v235, 7
    %v237 = vsub.s32 0, %v236
    %v238 = vrot.slane %v233, %v237
    %v240 = vmul.f32 %v232, %v238
    %v241 = vmul.f32 %v240, %v54
    %v242 = vadd.f32 %v241, %v42
    %243 = vst [vmem:[#allocation2] sm:$0x3] %v242
    // Predicated region
    $region34: #{tpu_custom_call.1} parent=1 // pred_check
      _
    $region35: #{tpu_custom_call.1} parent=1 // pred_check_branch
      %245 = sbr.rel (0) target = $region37
    $region36: #{tpu_custom_call.1} parent=1 // pred_region
      %s247 = ssub.s32 32, 32
      %248 = vsyncadd [#allocation3], %s247
      %s250 = sshll.u32 [#allocation2], 4
      %s251 = int_to_ptr.vmem [resolvable:$true] %s250
      %253 = dma.vmem_to_hbm [thread:$0]  %s251, 32, %s8, [#allocation3]
    $region37: #{tpu_custom_call.1} parent=1 // pred_fallthru
      _
    // Predicated region
    $region38: #{tpu_custom_call.1} parent=1 // pred_check
      _
    $region39: #{tpu_custom_call.1} parent=1 // pred_check_branch
      %255 = sbr.rel (0) target = $region41
    $region40: #{tpu_custom_call.1} parent=1 // pred_region
      %256 = dma.done [#allocation3], 32
    $region41: #{tpu_custom_call.1} parent=1 // pred_fallthru
      _
    %257 = vsyncpa [#allocation3], 1

</llo_original>
